<compile_context>
chip_gen: v7x
topology: tpu7x:2x2x1
jax: 0.10.0
libtpu: 0.0.40
codegen_flags: <defaults>
</compile_context>

<pallas_src>
import math
import functools

import jax
import jax.numpy as jnp
from jax import lax
from jax.experimental import pallas as pl
from jax.experimental.pallas import tpu as pltpu


def _msa_kernel(xq_ref, xs_ref, w_ref, b_ref, o_ref, kv_ref, *,
                n_heads, d_head, d, compute_dtype):
    # xq_ref: (TQ, d) query tile of one sequence (batch dim squeezed)
    # xs_ref: (N, d) full sequence (constant block index across q tiles)
    # w_ref : (d, 3d) block-diagonal fused QKV weight (scale folded into q)
    # b_ref : (1, 3d) fused bias
    # o_ref : (TQ, d) output tile
    # kv_ref: (N, 2d) persistent VMEM scratch holding [K | V] for the sequence

    @pl.when(pl.program_id(1) == 0)
    def _():
        # Project K and V for the whole sequence once per sequence; they stay
        # resident in VMEM scratch for all query tiles of this sequence.
        kv = jnp.dot(xs_ref[...], w_ref[:, d:],
                     preferred_element_type=jnp.float32)
        kv = kv + b_ref[:, d:].astype(jnp.float32)
        kv_ref[...] = kv.astype(kv_ref.dtype)

    # Q projection for this query tile (1/sqrt(d_head) already folded in).
    q = jnp.dot(xq_ref[...], w_ref[:, :d], preferred_element_type=jnp.float32)
    q = (q + b_ref[:, :d].astype(jnp.float32)).astype(compute_dtype)  # (TQ, d)

    k = kv_ref[:, :d]          # (N, d) compute_dtype
    v = kv_ref[:, d:]          # (N, d) compute_dtype

    # Small static head loop; each head's result is stored immediately so its
    # (TQ, N) score / prob intermediates are dead before the next head starts.
    for h in range(n_heads):
        sl = slice(h * d_head, (h + 1) * d_head)
        # q_h @ k_h.T without materializing a transpose (contract over d_head).
        s = lax.dot_general(q[:, sl], k[:, sl], (((1,), (1,)), ((), ())),
                            preferred_element_type=jnp.float32)      # (TQ, N)
        s = s - jnp.max(s, axis=-1, keepdims=True)
        p = jnp.exp(s)
        p = p * pl.reciprocal(jnp.sum(p, axis=-1, keepdims=True), approx=True)
        oh = jnp.dot(p.astype(v.dtype), v[:, sl],
                     preferred_element_type=jnp.float32)             # (TQ, d_head)
        o_ref[:, sl] = oh.astype(o_ref.dtype)


def _block_diag_from_heads(blocks):
    """(H, r, c) per-head matrices -> (H*r, H*c) block-diagonal matrix."""
    H, r, c = blocks.shape
    out = jnp.zeros((H * r, H * c), blocks.dtype)
    for h in range(H):
        out = out.at[h * r:(h + 1) * r, h * c:(h + 1) * c].set(blocks[h])
    return out


def _pick_tq(N, tq):
    if tq is not None:
        return tq
    if N <= 256:
        return N
    for cand in (256, 128, 64, 32, 16, 8):
        if N % cand == 0:
            return cand
    return N


def my_msa(x, wq, bq, wk, bk, wv, bv, *, n_heads, tq=None,
           compute_dtype=jnp.bfloat16):
    """x: (B, N, d).  w*: (n_heads, d_head, d_head) torch Linear layout
    (out, in).  b*: (n_heads, d_head)."""
    B, N, d = x.shape
    assert d % n_heads == 0
    d_head = d // n_heads
    scale = 1.0 / math.sqrt(float(d_head))

    tq = _pick_tq(N, tq)
    assert N % tq == 0, f"N={N} must be divisible by query tile {tq}"
    assert tq == N or tq % 8 == 0, "query tile must be a multiple of 8"
    n_qt = N // tq

    # Block-diagonal fused QKV weight (torch Linear is y = x @ W.T + b, so each
    # per-head (out, in) weight is transposed).  Column layout: [Q | K | V],
    # each d wide, head h occupying columns h*d_head:(h+1)*d_head of its block.
    # The softmax scale is folded into the q weights/bias (free at trace time).
    w_qkv = jnp.concatenate(
        [_block_diag_from_heads(jnp.swapaxes(wq, -1, -2) * scale),
         _block_diag_from_heads(jnp.swapaxes(wk, -1, -2)),
         _block_diag_from_heads(jnp.swapaxes(wv, -1, -2))], axis=-1)  # (d, 3d)
    b_qkv = jnp.concatenate([bq.reshape(-1) * scale,
                             bk.reshape(-1),
                             bv.reshape(-1)])[None, :]                # (1, 3d)

    # bf16 operands into the MXU (f32 accumulation); softmax math stays f32.
    x_c = x.astype(compute_dtype)
    w_c = w_qkv.astype(compute_dtype)
    b_c = b_qkv.astype(compute_dtype)

    isz = jnp.dtype(compute_dtype).itemsize
    osz = jnp.dtype(x.dtype).itemsize

    # VMEM budget (double-buffered inputs/outputs + resident K/V scratch +
    # f32 score temporaries), budgeted with v7x's smaller VMEM in mind.
    vmem_bytes = (2 * tq * d * isz                     # q tile
                  + 2 * N * d * isz                    # full sequence
                  + 2 * (d * 3 * d + 3 * d) * isz      # fused weights + bias
                  + 2 * tq * d * osz                   # output tile
                  + N * 2 * d * isz                    # resident K/V scratch
                  + 6 * tq * N * 4                     # f32 score/prob temps
                  + (2 << 20))                         # headroom
    vmem_limit = int(min(max(vmem_bytes, 32 << 20), 64 << 20))

    flops = int(B * (6 * N * d * d + 4 * N * N * d))
    cost = pl.CostEstimate(
        flops=flops,
        transcendentals=int(B * n_heads * N * N),
        bytes_accessed=int(isz * (2 * x.size + w_qkv.size + b_qkv.size)
                           + osz * x.size))

    kernel = functools.partial(_msa_kernel, n_heads=n_heads, d_head=d_head,
                               d=d, compute_dtype=compute_dtype)

    # Query tile of the current sequence (batch dim squeezed out).
    x_q_spec = pl.BlockSpec((None, tq, d), lambda b, i: (b, i, 0))
    # Full sequence: constant block index across q tiles -> DMA'd once/sequence.
    x_kv_spec = pl.BlockSpec((None, N, d), lambda b, i: (b, 0, 0))
    # Fused weights / bias: constant block index -> fetched once, stay resident.
    w_spec = pl.BlockSpec((d, 3 * d), lambda b, i: (0, 0))
    b_spec = pl.BlockSpec((1, 3 * d), lambda b, i: (0, 0))
    out_spec = pl.BlockSpec((None, tq, d), lambda b, i: (b, i, 0))

    out = pl.pallas_call(
        kernel,
        out_shape=jax.ShapeDtypeStruct((B, N, d), x.dtype),
        grid_spec=pltpu.PrefetchScalarGridSpec(
            num_scalar_prefetch=0,
            grid=(B, n_qt),
            in_specs=[x_q_spec, x_kv_spec, w_spec, b_spec],
            out_specs=out_spec,
            scratch_shapes=[pltpu.VMEM((N, 2 * d), compute_dtype)],
        ),
        compiler_params=pltpu.CompilerParams(
            # Batch axis is "parallel" (megacore); the q-tile axis carries the
            # resident K/V scratch, so it must stay "arbitrary".
            dimension_semantics=("parallel", "arbitrary"),
            vmem_limit_bytes=vmem_limit),
        cost_estimate=cost,
    )(x_c, x_c, w_c, b_c)
    return out


def _reference(x, wq, bq, wk, bk, wv, bv, *, n_heads):
    B, N, d = x.shape
    d_head = d // n_heads
    outs = []
    for b in range(B):
        heads = []
        for h in range(n_heads):
            seq = x[b, :, h * d_head:(h + 1) * d_head]
            q = seq @ wq[h].T + bq[h]
            k = seq @ wk[h].T + bk[h]
            v = seq @ wv[h].T + bv[h]
            att = jax.nn.softmax(q @ k.T / math.sqrt(d_head), axis=-1)
            heads.append(att @ v)
        outs.append(jnp.concatenate(heads, axis=-1))
    return jnp.stack(outs, axis=0)


if __name__ == "__main__":
    B, N, d, n_heads = 2, 16, 32, 2
    d_head = d // n_heads

    key = jax.random.PRNGKey(0)
    kx, kq, kbq, kk, kbk, kv, kbv = jax.random.split(key, 7)

    x = jax.random.normal(kx, (B, N, d), dtype=jnp.float32)

    # Deterministic "Linear"-style init: uniform(-1/sqrt(in), 1/sqrt(in)).
    bound = 1.0 / math.sqrt(d_head)
    wq = jax.random.uniform(kq, (n_heads, d_head, d_head), jnp.float32, -bound, bound)
    bq = jax.random.uniform(kbq, (n_heads, d_head), jnp.float32, -bound, bound)
    wk = jax.random.uniform(kk, (n_heads, d_head, d_head), jnp.float32, -bound, bound)
    bk = jax.random.uniform(kbk, (n_heads, d_head), jnp.float32, -bound, bound)
    wv = jax.random.uniform(kv, (n_heads, d_head, d_head), jnp.float32, -bound, bound)
    bv = jax.random.uniform(kbv, (n_heads, d_head), jnp.float32, -bound, bound)

    ref = _reference(x, wq, bq, wk, bk, wv, bv, n_heads=n_heads)

    # Exact-mode check (f32 operands): tight tolerance validates kernel
    # structure / tiling / softmax (approx reciprocal is the only deviation).
    out_f32 = jax.block_until_ready(
        my_msa(x, wq, bq, wk, bk, wv, bv, n_heads=n_heads, tq=8,
               compute_dtype=jnp.float32))
    assert out_f32.shape == (B, N, d)
    assert jnp.allclose(out_f32, ref, atol=2e-3, rtol=2e-3), "f32 mode mismatch"

    # Production mode (bf16 into the MXU, f32 softmax): bf16-level tolerance.
    out_bf16 = jax.block_until_ready(
        my_msa(x, wq, bq, wk, bk, wv, bv, n_heads=n_heads, tq=8))
    assert out_bf16.shape == (B, N, d)
    assert jnp.allclose(out_bf16, ref, atol=3e-2, rtol=3e-2), "bf16 mode mismatch"

    print("KERNEL_OK")
</pallas_src>

<mosaic_0001>
module attributes {stable_mosaic.version = 11 : i64} {
  func.func @_msa_kernel(%arg0: i32, %arg1: i32, %arg2: memref<1x8x32xf32, #tpu.memory_space<vmem>>, %arg3: memref<1x16x32xf32, #tpu.memory_space<vmem>>, %arg4: memref<32x96xf32, #tpu.memory_space<vmem>>, %arg5: memref<1x96xf32, #tpu.memory_space<vmem>>, %arg6: memref<1x8x32xf32, #tpu.memory_space<vmem>>, %arg7: memref<16x64xf32, #tpu.memory_space<vmem>>) attributes {dimension_semantics = [#tpu.dimension_semantics<parallel>, #tpu.dimension_semantics<arbitrary>], iteration_bounds = array<i64: 2, 2>, scalar_prefetch = 0 : i64, scratch_operands = 1 : i64, tpu.core_type = #tpu.core_type<tc>, window_params = [{transform_indices = @transform_0, window_bounds = array<i64: 1, 8, 32>}, {transform_indices = @transform_1, window_bounds = array<i64: 1, 16, 32>}, {pipeline_mode = #tpu.pipeline_mode<synchronous>, transform_indices = @transform_2, window_bounds = array<i64: 32, 96>}, {pipeline_mode = #tpu.pipeline_mode<synchronous>, transform_indices = @transform_3, window_bounds = array<i64: 1, 96>}, {transform_indices = @transform_4, window_bounds = array<i64: 1, 8, 32>}]} {
    %c0_i32 = arith.constant 0 : i32
    %0 = arith.cmpi eq, %arg1, %c0_i32 : i32
    %1 = arith.extui %0 : i1 to i32
    %c0_i32_0 = arith.constant 0 : i32
    %2 = arith.cmpi ne, %1, %c0_i32_0 : i32
    scf.if %2 {
      %c0_23 = arith.constant 0 : index
      %c0_24 = arith.constant 0 : index
      %c0_25 = arith.constant 0 : index
      %48 = vector.load %arg3[%c0_23, %c0_24, %c0_25] : memref<1x16x32xf32, #tpu.memory_space<vmem>>, vector<1x16x32xf32>
      %49 = vector.shape_cast %48 : vector<1x16x32xf32> to vector<16x32xf32>
      %c0_26 = arith.constant 0 : index
      %c32_27 = arith.constant 32 : index
      %50 = vector.load %arg4[%c0_26, %c32_27] : memref<32x96xf32, #tpu.memory_space<vmem>>, vector<32x64xf32>
      %cst_28 = arith.constant dense<0.000000e+00> : vector<16x64xf32>
      %51 = tpu.matmul %49, %50, %cst_28 {dimension_numbers = #tpu.dot_dimension_numbers<[1], [0], [0], [1], [0, 0, 1, 1], [], []>} : vector<16x32xf32>, vector<32x64xf32>, vector<16x64xf32> -> vector<16x64xf32>
      %c0_29 = arith.constant 0 : index
      %c32_30 = arith.constant 32 : index
      %52 = vector.load %arg5[%c0_29, %c32_30] : memref<1x96xf32, #tpu.memory_space<vmem>>, vector<1x64xf32>
      %53 = vector.broadcast %52 : vector<1x64xf32> to vector<16x64xf32>
      %54 = arith.addf %51, %53 : vector<16x64xf32>
      %c0_31 = arith.constant 0 : index
      %c0_32 = arith.constant 0 : index
      %55 = vector.load %arg7[%c0_31, %c0_32] : memref<16x64xf32, #tpu.memory_space<vmem>>, vector<16x64xf32>
      tpu.vector_store %arg7[%c0_31, %c0_32], %54 {strides = array<i32>} : memref<16x64xf32, #tpu.memory_space<vmem>>, vector<16x64xf32>,
    } else {
    }
    %c0 = arith.constant 0 : index
    %c0_1 = arith.constant 0 : index
    %c0_2 = arith.constant 0 : index
    %3 = vector.load %arg2[%c0, %c0_1, %c0_2] : memref<1x8x32xf32, #tpu.memory_space<vmem>>, vector<1x8x32xf32>
    %4 = vector.shape_cast %3 : vector<1x8x32xf32> to vector<8x32xf32>
    %c0_3 = arith.constant 0 : index
    %c0_4 = arith.constant 0 : index
    %5 = vector.load %arg4[%c0_3, %c0_4] : memref<32x96xf32, #tpu.memory_space<vmem>>, vector<32x32xf32>
    %cst = arith.constant dense<0.000000e+00> : vector<8x32xf32>
    %6 = tpu.matmul %4, %5, %cst {dimension_numbers = #tpu.dot_dimension_numbers<[1], [0], [0], [1], [0, 0, 1, 1], [], []>} : vector<8x32xf32>, vector<32x32xf32>, vector<8x32xf32> -> vector<8x32xf32>
    %c0_5 = arith.constant 0 : index
    %c0_6 = arith.constant 0 : index
    %7 = vector.load %arg5[%c0_5, %c0_6] : memref<1x96xf32, #tpu.memory_space<vmem>>, vector<1x32xf32>
    %8 = vector.broadcast %7 : vector<1x32xf32> to vector<8x32xf32>
    %9 = arith.addf %6, %8 : vector<8x32xf32>
    %c0_7 = arith.constant 0 : index
    %c0_8 = arith.constant 0 : index
    %10 = vector.load %arg7[%c0_7, %c0_8] : memref<16x64xf32, #tpu.memory_space<vmem>>, vector<16x32xf32>
    %c0_9 = arith.constant 0 : index
    %c32 = arith.constant 32 : index
    %11 = vector.load %arg7[%c0_9, %c32] : memref<16x64xf32, #tpu.memory_space<vmem>>, vector<16x32xf32>
    %12 = vector.extract_strided_slice %9 {offsets = [0, 0], sizes = [8, 16], strides = [1, 1]} : vector<8x32xf32> to vector<8x16xf32>
    %13 = vector.extract_strided_slice %10 {offsets = [0, 0], sizes = [16, 16], strides = [1, 1]} : vector<16x32xf32> to vector<16x16xf32>
    %cst_10 = arith.constant dense<0.000000e+00> : vector<8x16xf32>
    %14 = tpu.matmul %12, %13, %cst_10 {dimension_numbers = #tpu.dot_dimension_numbers<[1], [1], [0], [0], [0, 0, 1, 0], [], []>} : vector<8x16xf32>, vector<16x16xf32>, vector<8x16xf32> -> vector<8x16xf32>
    %cst_11 = arith.constant dense<0xFF800000> : vector<8xf32>
    %15 = vector.multi_reduction <maximumf>, %14, %cst_11 [1] : vector<8x16xf32> to vector<8xf32>
    %16 = vector.shape_cast %15 : vector<8xf32> to vector<8x1xf32>
    %17 = vector.broadcast %16 : vector<8x1xf32> to vector<8x16xf32>
    %18 = arith.subf %14, %17 : vector<8x16xf32>
    %19 = math.exp %18 : vector<8x16xf32>
    %cst_12 = arith.constant dense<0.000000e+00> : vector<8xf32>
    %20 = vector.multi_reduction <add>, %19, %cst_12 [1] : vector<8x16xf32> to vector<8xf32>
    %21 = vector.shape_cast %20 : vector<8xf32> to vector<8x1xf32>
    %22 = tpu.reciprocal %21 {approx = true} : vector<8x1xf32> -> vector<8x1xf32>
    %23 = vector.broadcast %22 : vector<8x1xf32> to vector<8x16xf32>
    %24 = arith.mulf %19, %23 : vector<8x16xf32>
    %25 = vector.extract_strided_slice %11 {offsets = [0, 0], sizes = [16, 16], strides = [1, 1]} : vector<16x32xf32> to vector<16x16xf32>
    %cst_13 = arith.constant dense<0.000000e+00> : vector<8x16xf32>
    %26 = tpu.matmul %24, %25, %cst_13 {dimension_numbers = #tpu.dot_dimension_numbers<[1], [0], [0], [1], [0, 0, 1, 1], [], []>} : vector<8x16xf32>, vector<16x16xf32>, vector<8x16xf32> -> vector<8x16xf32>
    %c0_14 = arith.constant 0 : index
    %c0_15 = arith.constant 0 : index
    %c0_16 = arith.constant 0 : index
    %27 = vector.load %arg6[%c0_14, %c0_15, %c0_16] : memref<1x8x32xf32, #tpu.memory_space<vmem>>, vector<1x8x16xf32>
    %28 = vector.shape_cast %27 : vector<1x8x16xf32> to vector<8x16xf32>
    %29 = vector.shape_cast %26 : vector<8x16xf32> to vector<1x8x16xf32>
    tpu.vector_store %arg6[%c0_14, %c0_15, %c0_16], %29 {strides = array<i32>} : memref<1x8x32xf32, #tpu.memory_space<vmem>>, vector<1x8x16xf32>,
    %30 = vector.extract_strided_slice %9 {offsets = [0, 16], sizes = [8, 16], strides = [1, 1]} : vector<8x32xf32> to vector<8x16xf32>
    %31 = vector.extract_strided_slice %10 {offsets = [0, 16], sizes = [16, 16], strides = [1, 1]} : vector<16x32xf32> to vector<16x16xf32>
    %cst_17 = arith.constant dense<0.000000e+00> : vector<8x16xf32>
    %32 = tpu.matmul %30, %31, %cst_17 {dimension_numbers = #tpu.dot_dimension_numbers<[1], [1], [0], [0], [0, 0, 1, 0], [], []>} : vector<8x16xf32>, vector<16x16xf32>, vector<8x16xf32> -> vector<8x16xf32>
    %cst_18 = arith.constant dense<0xFF800000> : vector<8xf32>
    %33 = vector.multi_reduction <maximumf>, %32, %cst_18 [1] : vector<8x16xf32> to vector<8xf32>
    %34 = vector.shape_cast %33 : vector<8xf32> to vector<8x1xf32>
    %35 = vector.broadcast %34 : vector<8x1xf32> to vector<8x16xf32>
    %36 = arith.subf %32, %35 : vector<8x16xf32>
    %37 = math.exp %36 : vector<8x16xf32>
    %cst_19 = arith.constant dense<0.000000e+00> : vector<8xf32>
    %38 = vector.multi_reduction <add>, %37, %cst_19 [1] : vector<8x16xf32> to vector<8xf32>
    %39 = vector.shape_cast %38 : vector<8xf32> to vector<8x1xf32>
    %40 = tpu.reciprocal %39 {approx = true} : vector<8x1xf32> -> vector<8x1xf32>
    %41 = vector.broadcast %40 : vector<8x1xf32> to vector<8x16xf32>
    %42 = arith.mulf %37, %41 : vector<8x16xf32>
    %43 = vector.extract_strided_slice %11 {offsets = [0, 16], sizes = [16, 16], strides = [1, 1]} : vector<16x32xf32> to vector<16x16xf32>
    %cst_20 = arith.constant dense<0.000000e+00> : vector<8x16xf32>
    %44 = tpu.matmul %42, %43, %cst_20 {dimension_numbers = #tpu.dot_dimension_numbers<[1], [0], [0], [1], [0, 0, 1, 1], [], []>} : vector<8x16xf32>, vector<16x16xf32>, vector<8x16xf32> -> vector<8x16xf32>
    %c0_21 = arith.constant 0 : index
    %c0_22 = arith.constant 0 : index
    %c16 = arith.constant 16 : index
    %45 = vector.load %arg6[%c0_21, %c0_22, %c16] : memref<1x8x32xf32, #tpu.memory_space<vmem>>, vector<1x8x16xf32>
    %46 = vector.shape_cast %45 : vector<1x8x16xf32> to vector<8x16xf32>
    %47 = vector.shape_cast %44 : vector<8x16xf32> to vector<1x8x16xf32>
    tpu.vector_store %arg6[%c0_21, %c0_22, %c16], %47 {strides = array<i32>} : memref<1x8x32xf32, #tpu.memory_space<vmem>>, vector<1x8x16xf32>,
    return
  }
  func.func @transform_0(%arg0: i32, %arg1: i32) -> (i32, i32, i32) {
    %c0_i32 = arith.constant 0 : i32
    %c0_i32_0 = arith.constant 0 : i32
    return %arg0, %arg1, %c0_i32 : i32, i32, i32
  }
  func.func @transform_1(%arg0: i32, %arg1: i32) -> (i32, i32, i32) {
    %c0_i32 = arith.constant 0 : i32
    %c0_i32_0 = arith.constant 0 : i32
    %c0_i32_1 = arith.constant 0 : i32
    return %arg0, %c0_i32, %c0_i32_0 : i32, i32, i32
  }
  func.func @transform_2(%arg0: i32, %arg1: i32) -> (i32, i32) {
    %c0_i32 = arith.constant 0 : i32
    %c0_i32_0 = arith.constant 0 : i32
    %c0_i32_1 = arith.constant 0 : i32
    return %c0_i32, %c0_i32_0 : i32, i32
  }
  func.func @transform_3(%arg0: i32, %arg1: i32) -> (i32, i32) {
    %c0_i32 = arith.constant 0 : i32
    %c0_i32_0 = arith.constant 0 : i32
    %c0_i32_1 = arith.constant 0 : i32
    return %c0_i32, %c0_i32_0 : i32, i32
  }
  func.func @transform_4(%arg0: i32, %arg1: i32) -> (i32, i32, i32) {
    %c0_i32 = arith.constant 0 : i32
    %c0_i32_0 = arith.constant 0 : i32
    return %arg0, %arg1, %c0_i32 : i32, i32, i32
  }
}

</mosaic_0001>

<llo_original>
// kernel: tpu_custom_call.1
$region0: #{tpu_custom_call.1}
  #allocation0 [shape = 'u32[]', space=smem, size = 0x4, offset = 0x4, fixed_abs, tag = 'smem constant byte address 0x4 - core index']
  #allocation1 [shape = 'u32[144,128]{1,0:T(1,128)}', space=vmem, size = 0x12000, scoped, tag = 'internal scratch']
  #allocation2 [shape = 'f32[16,64]{1,0:T(8,128)}', space=vmem, size = 0x2000, scoped, tag = 'scratch operand']
  %s0 = inlined_call_operand.hbm [shape: f32[2,16,32], index: 0, kind: input, shape index: {}]
  %s1 = inlined_call_operand.hbm [shape: f32[2,16,32], index: 1, kind: input, shape index: {}]
  %s2 = inlined_call_operand.hbm [shape: f32[32,96], index: 2, kind: input, shape index: {}]
  %s3 = inlined_call_operand.vmem [shape: f32[1,96], index: 3, kind: input, shape index: {}]
  %s4 = inlined_call_operand.hbm [shape: f32[2,16,32], index: 4, kind: output, shape index: {}]
  %s5 = sld [smem:[#allocation0]]
  $region65: #{tpu_custom_call.1} parent=0
    _
  %s7 = ssub.s32 1, %s5
  %s8 = scalar_select 0, %s7, %s5
  $region1: #{tpu_custom_call.1} parent=0
    #allocation3 [shape = 'u8[8192]{0}', space=vmem, size = 0x2000, scoped, tag = 'input window, operand 0']
    #allocation4 [shape = 's32[2]{0}', space=sflag, size = 0x8, scoped, tag = 'scoped memory for tpu_custom_call.1']
    #allocation5 [shape = 's32[2]{0}', space=sflag, size = 0x8, scoped, tag = 'scoped memory for tpu_custom_call.1']
    #allocation6 [shape = 'u8[16384]{0}', space=vmem, size = 0x4000, scoped, tag = 'input window, operand 1']
    #allocation7 [shape = 's32[2]{0}', space=sflag, size = 0x8, scoped, tag = 'scoped memory for tpu_custom_call.1']
    #allocation8 [shape = 'u8[16384]{0}', space=vmem, size = 0x4000, scoped, tag = 'input window, operand 2, single buffered']
    #allocation9 [shape = 'u8[8192]{0}', space=vmem, size = 0x2000, scoped, tag = 'output window, operand 0']
    %9 = vsyncpa [#allocation4], 0
    %s10 = scalar_lea.sflag [#allocation4], 1
    %11 = vsyncpa %s10, 0
    %12 = vsyncpa [#allocation7], 0
    %s13 = scalar_lea.sflag [#allocation7], 1
    %14 = vsyncpa %s13, 0
    %15 = vsyncpa [#allocation5], 0
    %s16 = scalar_lea.sflag [#allocation5], 1
    %17 = vsyncpa %s16, 0
    loop: start=0, step=1, limit=6
    $region2: #{tpu_custom_call.1} parent=1 // loop_pre_header
      _
    $region3: #{tpu_custom_call.1} parent=1 // loop_header
      %s19 = sphi 0, %s23
      %p20 = scmp.ge.s32.totalorder %s19, 6
      %s26 = sphi 0, %s38
      %s27 = sphi 0, %s34
      %s28 = sphi 0, %s26
      %s29 = sphi 0, %s27
      %s30 = sphi 0, %s28
      %s31 = sphi 0, %s29
      %s43 = sphi 0, %s45
      %s46 = sphi 0, %s43
      %s47 = sphi 0, %s46
      %s63 = sphi 0, %s47
      %s69 = sphi 0, %s71
      %s72 = sphi 0, %s69
      %s73 = sphi 0, %s72
      %s89 = sphi 0, %s73
      %s93 = sphi 0, %s93
      %s95 = sphi 0, %s93
      %s96 = sphi 0, %s95
      %s110 = sphi 0, %s96
      %s114 = sphi 0, %s114
      %s116 = sphi 0, %s114
      %s117 = sphi 0, %s116
      %s131 = sphi 0, %s117
      %s139 = sphi 0, %s141
      %s142 = sphi 0, %s139
      %s143 = sphi 0, %s142
      %s159 = sphi 0, %s143
    $region4: #{tpu_custom_call.1} parent=1 // loop_header_branch
      %22 = sbr.rel (%p20) target = $region8
    $region5: #{tpu_custom_call.1} parent=1 // loop_body
      %s24 = ssub.s32 %s19, 1
      %s25 = ssub.s32 %s19, 2
      %s32 = sadd.s32 1, %s27
      %p33 = scmp.ge.s32.totalorder %s32, 2
      %s34 = scalar_select %p33, 0, %s32
      %s35 = sadd.s32 1, %s26
      %s36 = scalar_select %p33, %s35, %s26
      %p37 = scmp.ge.s32.totalorder %s36, 2
      %s38 = scalar_select %p37, 0, %s36
      %s39 = ssub.s32 %s26, %s38
      %s40 = ssub.s32 %s27, %s34
      %s41 = sor.u32 %s39, %s40
      %p42 = scmp.eq.s32.totalorder %s41, 0
      %s44 = sadd.s32 %s43, 1
      %s45 = scalar_select %p42, %s43, %s44
      %p48 = pneg %p42
      %p49 = scmp.eq.s32.totalorder %s19, 3
      %p50 = por %p48, %p49
      %p51 = scmp.ne.s32.totalorder %s43, %s46
      %p52 = scmp.eq.s32.totalorder %s19, 0
      %p53 = por %p51, %p52
      %p54 = scmp.ne.s32.totalorder %s43, %s46
      %p55 = scmp.eq.s32.totalorder %s24, 3
      %p56 = por %p54, %p55
      %p57 = scmp.ne.s32.totalorder %s46, %s47
      %p58 = scmp.eq.s32.totalorder %s24, 0
      %p59 = por %p57, %p58
      %p60 = scmp.ne.s32.totalorder %s46, %s47
      %p61 = scmp.eq.s32.totalorder %s25, 3
      %p62 = por %p60, %p61
      %p64 = scmp.ne.s32.totalorder %s47, %s63
      %p65 = scmp.eq.s32.totalorder %s25, 0
      %p66 = por %p64, %p65
      %s67 = ssub.s32 %s26, %s38
      %p68 = scmp.eq.s32.totalorder %s67, 0
      %s70 = sadd.s32 %s69, 1
      %s71 = scalar_select %p68, %s69, %s70
      %p74 = pneg %p68
      %p75 = scmp.eq.s32.totalorder %s19, 3
      %p76 = por %p74, %p75
      %p77 = scmp.ne.s32.totalorder %s69, %s72
      %p78 = scmp.eq.s32.totalorder %s19, 0
      %p79 = por %p77, %p78
      %p80 = scmp.ne.s32.totalorder %s69, %s72
      %p81 = scmp.eq.s32.totalorder %s24, 3
      %p82 = por %p80, %p81
      %p83 = scmp.ne.s32.totalorder %s72, %s73
      %p84 = scmp.eq.s32.totalorder %s24, 0
      %p85 = por %p83, %p84
      %p86 = scmp.ne.s32.totalorder %s72, %s73
      %p87 = scmp.eq.s32.totalorder %s25, 3
      %p88 = por %p86, %p87
      %p90 = scmp.ne.s32.totalorder %s73, %s89
      %p91 = scmp.eq.s32.totalorder %s25, 0
      %p92 = por %p90, %p91
      %s94 = sadd.s32 %s93, 1
      %p97 = scmp.eq.s32.totalorder %s19, 3
      %p98 = scmp.ne.s32.totalorder %s93, %s95
      %p99 = scmp.eq.s32.totalorder %s19, 0
      %p100 = por %p98, %p99
      %p101 = scmp.ne.s32.totalorder %s93, %s95
      %p102 = scmp.eq.s32.totalorder %s24, 3
      %p103 = por %p101, %p102
      %p104 = scmp.ne.s32.totalorder %s95, %s96
      %p105 = scmp.eq.s32.totalorder %s24, 0
      %p106 = por %p104, %p105
      %p107 = scmp.ne.s32.totalorder %s95, %s96
      %p108 = scmp.eq.s32.totalorder %s25, 3
      %p109 = por %p107, %p108
      %p111 = scmp.ne.s32.totalorder %s96, %s110
      %p112 = scmp.eq.s32.totalorder %s25, 0
      %p113 = por %p111, %p112
      %s115 = sadd.s32 %s114, 1
      %p118 = scmp.eq.s32.totalorder %s19, 3
      %p119 = scmp.ne.s32.totalorder %s114, %s116
      %p120 = scmp.eq.s32.totalorder %s19, 0
      %p121 = por %p119, %p120
      %p122 = scmp.ne.s32.totalorder %s114, %s116
      %p123 = scmp.eq.s32.totalorder %s24, 3
      %p124 = por %p122, %p123
      %p125 = scmp.ne.s32.totalorder %s116, %s117
      %p126 = scmp.eq.s32.totalorder %s24, 0
      %p127 = por %p125, %p126
      %p128 = scmp.ne.s32.totalorder %s116, %s117
      %p129 = scmp.eq.s32.totalorder %s25, 3
      %p130 = por %p128, %p129
      %p132 = scmp.ne.s32.totalorder %s117, %s131
      %p133 = scmp.eq.s32.totalorder %s25, 0
      %p134 = por %p132, %p133
      %s135 = ssub.s32 %s26, %s38
      %s136 = ssub.s32 %s27, %s34
      %s137 = sor.u32 %s135, %s136
      %p138 = scmp.eq.s32.totalorder %s137, 0
      %s140 = sadd.s32 %s139, 1
      %s141 = scalar_select %p138, %s139, %s140
      %p144 = pneg %p138
      %p145 = scmp.eq.s32.totalorder %s19, 3
      %p146 = por %p144, %p145
      %p147 = scmp.ne.s32.totalorder %s139, %s142
      %p148 = scmp.eq.s32.totalorder %s19, 0
      %p149 = por %p147, %p148
      %p150 = scmp.ne.s32.totalorder %s139, %s142
      %p151 = scmp.eq.s32.totalorder %s24, 3
      %p152 = por %p150, %p151
      %p153 = scmp.ne.s32.totalorder %s142, %s143
      %p154 = scmp.eq.s32.totalorder %s24, 0
      %p155 = por %p153, %p154
      %p156 = scmp.ne.s32.totalorder %s142, %s143
      %p157 = scmp.eq.s32.totalorder %s25, 3
      %p158 = por %p156, %p157
      %p160 = scmp.ne.s32.totalorder %s143, %s159
      %p161 = scmp.eq.s32.totalorder %s25, 0
      %p162 = por %p160, %p161
      %p163 = scmp.le.s32.totalorder 1, %s19
      %p164 = scmp.lt.s32.totalorder %s19, 5
      %p165 = pnand %p163, %p164
      %p166 = pneg %p165
      // Predicated region
      $region9: #{tpu_custom_call.1} parent=5 // pred_check
        _
      $region10: #{tpu_custom_call.1} parent=5 // pred_check_branch
        %168 = sbr.rel (%p165) target = $region12
      $region11: #{tpu_custom_call.1} parent=5 // pred_region
        %s169 = ssub.s32 %s19, 1
        // Predicated region
        $region13: #{tpu_custom_call.1} parent=11 // pred_check
          %p170 = pneg %p106
        $region14: #{tpu_custom_call.1} parent=11 // pred_check_branch
          %172 = sbr.rel (%p170) target = $region16
        $region15: #{tpu_custom_call.1} parent=11 // pred_region
          %s174 = ssub.s32 512, 512
          %175 = vsyncadd [#allocation7], %s174
          %s176 = sshll.u32 [#allocation8], 4
          %s177 = int_to_ptr.vmem [resolvable:$true] %s176
          %182 = dma.hbm_to_vmem [thread:$0]  %s2, 512, %s177, [#allocation7], 128, 128, 8
        $region16: #{tpu_custom_call.1} parent=11 // pred_fallthru
          _
        // Predicated region
        $region17: #{tpu_custom_call.1} parent=11 // pred_check
          %p183 = pneg %p127
        $region18: #{tpu_custom_call.1} parent=11 // pred_check_branch
          %185 = sbr.rel (%p183) target = $region20
        $region19: #{tpu_custom_call.1} parent=11 // pred_region
          _
        $region20: #{tpu_custom_call.1} parent=11 // pred_fallthru
          _
      $region12: #{tpu_custom_call.1} parent=5 // pred_fallthru
        _
      %p186 = scmp.lt.s32.totalorder %s19, 4
      // Predicated region
      $region21: #{tpu_custom_call.1} parent=5 // pred_check
        %p187 = pneg %p186
      $region22: #{tpu_custom_call.1} parent=5 // pred_check_branch
        %189 = sbr.rel (%p187) target = $region24
      $region23: #{tpu_custom_call.1} parent=5 // pred_region
        // Predicated region
        $region25: #{tpu_custom_call.1} parent=23 // pred_check
          %p190 = pneg %p53
        $region26: #{tpu_custom_call.1} parent=23 // pred_check_branch
          %192 = sbr.rel (%p190) target = $region28
        $region27: #{tpu_custom_call.1} parent=23 // pred_region
          %s193 = sand.u32 %s43, 1
          %s194 = scalar_lea.sflag [#allocation4], %s193
          %s195 = sand.u32 %s43, 1
          %s196 = smul.addr %s195, 8
          %s197 = scalar_lea.vmem [#allocation3], %s196
          %s199 = ssub.s32 128, 128
          %200 = vsyncadd %s194, %s199
          %s201 = smul.addr %s26, 2
          %s202 = sadd.s32 %s27, %s201
          %s203 = smul.addr %s202, 128
          %s204 = scalar_lea.hbm %s0, %s203
          %s206 = sshll.u32 %s197, 4
          %s207 = int_to_ptr.vmem [resolvable:$true] %s206
          %209 = dma.hbm_to_vmem [thread:$0]  %s204, 128, %s207, %s194
        $region28: #{tpu_custom_call.1} parent=23 // pred_fallthru
          _
        // Predicated region
        $region29: #{tpu_custom_call.1} parent=23 // pred_check
          %p210 = pneg %p79
        $region30: #{tpu_custom_call.1} parent=23 // pred_check_branch
          %212 = sbr.rel (%p210) target = $region32
        $region31: #{tpu_custom_call.1} parent=23 // pred_region
          %s213 = sand.u32 %s19, 1
          %s214 = scalar_lea.sflag [#allocation7], %s213
          %s215 = sand.u32 %s69, 1
          %s216 = smul.addr %s215, 16
          %s217 = scalar_lea.vmem [#allocation6], %s216
          %s219 = ssub.s32 256, 256
          %220 = vsyncadd %s214, %s219
          %s221 = smul.addr %s26, 2
          %s222 = smul.addr %s221, 128
          %s223 = scalar_lea.hbm %s1, %s222
          %s224 = sshll.u32 %s217, 4
          %s225 = int_to_ptr.vmem [resolvable:$true] %s224
          %230 = dma.hbm_to_vmem [thread:$0]  %s223, 256, %s225, %s214, 128, 128, 8
        $region32: #{tpu_custom_call.1} parent=23 // pred_fallthru
          _
      $region24: #{tpu_custom_call.1} parent=5 // pred_fallthru
        _
      %p231 = scmp.le.s32.totalorder 1, %s19
      %p232 = scmp.lt.s32.totalorder %s19, 5
      %p233 = pnand %p231, %p232
      %p234 = pneg %p233
      // Predicated region
      $region33: #{tpu_custom_call.1} parent=5 // pred_check
        _
      $region34: #{tpu_custom_call.1} parent=5 // pred_check_branch
        %236 = sbr.rel (%p233) target = $region36
      $region35: #{tpu_custom_call.1} parent=5 // pred_region
        %s237 = ssub.s32 %s19, 1
        %s238 = sand.u32 %s46, 1
        %s239 = scalar_lea.sflag [#allocation4], %s238
        %s240 = sand.u32 %s46, 1
        %s241 = smul.addr %s240, 8
        %s242 = scalar_lea.vmem [#allocation3], %s241
        // Predicated region
        $region37: #{tpu_custom_call.1} parent=35 // pred_check
          %p243 = pneg %p59
        $region38: #{tpu_custom_call.1} parent=35 // pred_check_branch
          %245 = sbr.rel (%p243) target = $region40
        $region39: #{tpu_custom_call.1} parent=35 // pred_region
          %246 = dma.done %s239, 128
        $region40: #{tpu_custom_call.1} parent=35 // pred_fallthru
          _
        %s247 = sand.u32 %s24, 1
        %s248 = scalar_lea.sflag [#allocation7], %s247
        %s249 = sand.u32 %s72, 1
        %s250 = smul.addr %s249, 16
        %s251 = scalar_lea.vmem [#allocation6], %s250
        // Predicated region
        $region41: #{tpu_custom_call.1} parent=35 // pred_check
          %p252 = pneg %p85
        $region42: #{tpu_custom_call.1} parent=35 // pred_check_branch
          %254 = sbr.rel (%p252) target = $region44
        $region43: #{tpu_custom_call.1} parent=35 // pred_region
          %255 = dma.done %s248, 256
        $region44: #{tpu_custom_call.1} parent=35 // pred_fallthru
          _
        // Predicated region
        $region45: #{tpu_custom_call.1} parent=35 // pred_check
          %p256 = pneg %p106
        $region46: #{tpu_custom_call.1} parent=35 // pred_check_branch
          %258 = sbr.rel (%p256) target = $region48
        $region47: #{tpu_custom_call.1} parent=35 // pred_region
          %259 = dma.done [#allocation7], 512
        $region48: #{tpu_custom_call.1} parent=35 // pred_fallthru
          _
        %s260 = sand.u32 %s46, 1
        %s261 = scalar_lea.sflag [#allocation4], %s260
        %s262 = sand.u32 %s46, 1
        %s263 = smul.addr %s262, 8
        %s264 = scalar_lea.vmem [#allocation3], %s263
        %p265 = pneg %p59
        %p266 = pneg %p56
        %s267 = sand.u32 %s24, 1
        %s268 = scalar_lea.sflag [#allocation7], %s267
        %s269 = sand.u32 %s72, 1
        %s270 = smul.addr %s269, 16
        %s271 = scalar_lea.vmem [#allocation6], %s270
        %p272 = pneg %p85
        %p273 = pneg %p82
        %p274 = pneg %p106
        %p275 = pneg %p103
        %p276 = pneg %p127
        %p277 = pneg %p124
        %p278 = pneg %p155
        %p279 = pneg %p152
        %s280 = sand.u32 %s142, 1
        %s281 = scalar_lea.sflag [#allocation5], %s280
        %s282 = sand.u32 %s142, 1
        %s283 = smul.addr %s282, 8
        %s284 = scalar_lea.vmem [#allocation9], %s283
        %p285 = scmp.eq.s32.totalorder %s29, 0
        // Predicated region
        $region49: #{tpu_custom_call.1} parent=35 // pred_check
          %p286 = pneg %p285
        $region50: #{tpu_custom_call.1} parent=35 // pred_check_branch
          %288 = sbr.rel (%p286) target = $region52
        $region51: #{tpu_custom_call.1} parent=35 // pred_region
          %v289 = vld [vmem:[%s251] sm:$0xff]
          %v290 = vld [vmem:[%s251 + $0x8] sm:$0xff]
          %v291 = vld [vmem:[#allocation8] sm:$0xff]
          %v292 = vld [vmem:[#allocation8 + $0x8] sm:$0xff]
          %v293 = vld [vmem:[#allocation8 + $0x10] sm:$0xff]
          %v294 = vld [vmem:[#allocation8 + $0x18] sm:$0xff]
          %v295 = vld [vmem:[%s3] sm:$0x1]
          %v297 = vlaneseq
          %v298 = vshrl.u32 %v297, 7
          %v299 = vsub.s32 0, %v298
          %v300 = vrot.slane %v295, %v299
          %305 = vrot.lane.b32.xlu0 %v291, 96
          %v306 = vpop.permute.xlu0 %305
          %307 = vrot.lane.b32.xlu0 %v292, 96
          %v308 = vpop.permute.xlu0 %307
          %309 = vrot.lane.b32.xlu0 %v293, 96
          %v310 = vpop.permute.xlu0 %309
          %311 = vrot.lane.b32.xlu0 %v294, 96
          %v312 = vpop.permute.xlu0 %311
          %317 = vrot.lane.b32.xlu0 %v300, 96
          %v318 = vpop.permute.xlu0 %317
          %vm320 = vcmask 261120
          %v322 = vsel %vm320, %v289, 0
          %v325 = vsel %vm320, %v290, 0
          %327 = vmatprep.subr.mxu0 0.0
          %328 = vmatpush1.msra.mxu0 %v306
          %329 = vmatprep.subr.mxu0 0.0
          %330 = vmatpush1.msra.mxu0 %v308
          %331 = vmatprep.subr.mxu0 0.0
          %332 = vmatpush1.msra.mxu0 %v310
          %333 = vmatprep.subr.mxu0 0.0
          %334 = vmatpush1.msra.mxu0 %v312
          %335 = vmatprep.subr.mxu0 0.0
          %336 = vmatpush1.msra.mxu0 0.0
          %337 = vmatprep.subr.mxu0 0.0
          %338 = vmatpush1.msra.mxu0 0.0
          %339 = vmatprep.subr.mxu0 0.0
          %340 = vmatpush1.msra.mxu0 0.0
          %341 = vmatprep.subr.mxu0 0.0
          %342 = vmatpush1.msra.mxu0 0.0
          %343 = vmatprep.subr.mxu0 0.0
          %344 = vmatpush1.msra.mxu0 0.0
          %345 = vmatprep.subr.mxu0 0.0
          %346 = vmatpush1.msra.mxu0 0.0
          %347 = vmatprep.subr.mxu0 0.0
          %348 = vmatpush1.msra.mxu0 0.0
          %349 = vmatprep.subr.mxu0 0.0
          %350 = vmatpush1.msra.mxu0 0.0
          %351 = vmatprep.subr.mxu0 0.0
          %352 = vmatpush1.msra.mxu0 0.0
          %353 = vmatprep.subr.mxu0 0.0
          %354 = vmatpush1.msra.mxu0 0.0
          %355 = vmatprep.subr.mxu0 0.0
          %356 = vmatpush1.msra.mxu0 0.0
          %357 = vmatprep.subr.mxu0 0.0
          %358 = vmatpush1.msra.mxu0 0.0
          %359 = vmatprep.subr.mxu0 0.0
          %360 = vmatpush1.msra.mxu0 0.0
          %361 = vmatprep.subr.mxu0 0.0
          %362 = vmatpush1.msra.mxu0 0.0
          %363 = vmatprep.subr.mxu0 0.0
          %364 = vmatpush1.msra.mxu0 0.0
          %365 = vmatprep.subr.mxu0 0.0
          %366 = vmatpush1.msra.mxu0 0.0
          %367 = vmatprep.subr.mxu0 0.0
          %368 = vmatpush1.msra.mxu0 0.0
          %369 = vmatprep.subr.mxu0 0.0
          %370 = vmatpush1.msra.mxu0 0.0
          %371 = vmatprep.subr.mxu0 0.0
          %372 = vmatpush1.msra.mxu0 0.0
          %373 = vmatprep.subr.mxu0 0.0
          %374 = vmatpush1.msra.mxu0 0.0
          %375 = vmatprep.subr.mxu0 0.0
          %376 = vmatpush1.msra.mxu0 0.0
          %377 = vmatprep.subr.mxu0 0.0
          %378 = vmatpush1.msra.mxu0 0.0
          %379 = vmatprep.subr.mxu0 0.0
          %380 = vmatpush1.msra.mxu0 0.0
          %381 = vmatprep.subr.mxu0 0.0
          %382 = vmatpush1.msra.mxu0 0.0
          %383 = vmatprep.subr.mxu0 0.0
          %384 = vmatpush1.msra.mxu0 0.0
          %385 = vmatprep.subr.mxu0 0.0
          %386 = vmatpush1.msra.mxu0 0.0
          %387 = vmatprep.subr.mxu0 0.0
          %388 = vmatpush1.msra.mxu0 0.0
          %389 = vmatprep.subr.mxu0 0.0
          %390 = vmatpush1.msra.mxu0 0.0
          %391 = vmatprep.mubr.f32.mxu0 0.0
          %392 = vmatmul.mubr.f32.gmra.mrb[0].mxu0 %v322
          %v393 = vpop.f32.mrb[0].mxu0
          %v394 = vadd.f32 %v318, %v393
          %v395 = vpop.f32.mrb[0].mxu0
          %396 = vmatprep.mubr.f32.mxu0 0.0
          %397 = vmatmul.mubr.f32.gmra.mrb[0].mxu0 %v325
          %v398 = vpop.f32.mrb[0].mxu0
          %v399 = vadd.f32 %v318, %v398
          %v400 = vpop.f32.mrb[0].mxu0
          %401 = vdwg.mxu0
          %vm402 = vcmask 523264
          %403 = vst.msk [vmem:[#allocation2] sm:$0xff] %vm402, %v394
          %404 = vst.msk [vmem:[#allocation2 + $0x8] sm:$0xff] %vm402, %v399
        $region52: #{tpu_custom_call.1} parent=35 // pred_fallthru
          _
        %v405 = vld [vmem:[%s242] sm:$0xff]
        %v406 = vld [vmem:[#allocation8] sm:$0xff]
        %v407 = vld [vmem:[#allocation8 + $0x8] sm:$0xff]
        %v408 = vld [vmem:[#allocation8 + $0x10] sm:$0xff]
        %v409 = vld [vmem:[#allocation8 + $0x18] sm:$0xff]
        %v410 = vld [vmem:[%s3] sm:$0x1]
        %v412 = vlaneseq
        %v413 = vshrl.u32 %v412, 7
        %v414 = vsub.s32 0, %v413
        %v415 = vrot.slane %v410, %v414
        %vm417 = vcmask 261120
        %v419 = vsel %vm417, %v405, 0
        %421 = vmatprep.subr.mxu0 0.0
        %422 = vmatpush1.msra.mxu0 %v406
        %423 = vmatprep.subr.mxu0 0.0
        %424 = vmatpush1.msra.mxu0 %v407
        %425 = vmatprep.subr.mxu0 0.0
        %426 = vmatpush1.msra.mxu0 %v408
        %427 = vmatprep.subr.mxu0 0.0
        %428 = vmatpush1.msra.mxu0 %v409
        %429 = vmatprep.subr.mxu0 0.0
        %430 = vmatpush1.msra.mxu0 0.0
        %431 = vmatprep.subr.mxu0 0.0
        %432 = vmatpush1.msra.mxu0 0.0
        %433 = vmatprep.subr.mxu0 0.0
        %434 = vmatpush1.msra.mxu0 0.0
        %435 = vmatprep.subr.mxu0 0.0
        %436 = vmatpush1.msra.mxu0 0.0
        %437 = vmatprep.subr.mxu0 0.0
        %438 = vmatpush1.msra.mxu0 0.0
        %439 = vmatprep.subr.mxu0 0.0
        %440 = vmatpush1.msra.mxu0 0.0
        %441 = vmatprep.subr.mxu0 0.0
        %442 = vmatpush1.msra.mxu0 0.0
        %443 = vmatprep.subr.mxu0 0.0
        %444 = vmatpush1.msra.mxu0 0.0
        %445 = vmatprep.subr.mxu0 0.0
        %446 = vmatpush1.msra.mxu0 0.0
        %447 = vmatprep.subr.mxu0 0.0
        %448 = vmatpush1.msra.mxu0 0.0
        %449 = vmatprep.subr.mxu0 0.0
        %450 = vmatpush1.msra.mxu0 0.0
        %451 = vmatprep.subr.mxu0 0.0
        %452 = vmatpush1.msra.mxu0 0.0
        %453 = vmatprep.subr.mxu0 0.0
        %454 = vmatpush1.msra.mxu0 0.0
        %455 = vmatprep.subr.mxu0 0.0
        %456 = vmatpush1.msra.mxu0 0.0
        %457 = vmatprep.subr.mxu0 0.0
        %458 = vmatpush1.msra.mxu0 0.0
        %459 = vmatprep.subr.mxu0 0.0
        %460 = vmatpush1.msra.mxu0 0.0
        %461 = vmatprep.subr.mxu0 0.0
        %462 = vmatpush1.msra.mxu0 0.0
        %463 = vmatprep.subr.mxu0 0.0
        %464 = vmatpush1.msra.mxu0 0.0
        %465 = vmatprep.subr.mxu0 0.0
        %466 = vmatpush1.msra.mxu0 0.0
        %467 = vmatprep.subr.mxu0 0.0
        %468 = vmatpush1.msra.mxu0 0.0
        %469 = vmatprep.subr.mxu0 0.0
        %470 = vmatpush1.msra.mxu0 0.0
        %471 = vmatprep.subr.mxu0 0.0
        %472 = vmatpush1.msra.mxu0 0.0
        %473 = vmatprep.subr.mxu0 0.0
        %474 = vmatpush1.msra.mxu0 0.0
        %475 = vmatprep.subr.mxu0 0.0
        %476 = vmatpush1.msra.mxu0 0.0
        %477 = vmatprep.subr.mxu0 0.0
        %478 = vmatpush1.msra.mxu0 0.0
        %479 = vmatprep.subr.mxu0 0.0
        %480 = vmatpush1.msra.mxu0 0.0
        %481 = vmatprep.subr.mxu0 0.0
        %482 = vmatpush1.msra.mxu0 0.0
        %483 = vmatprep.subr.mxu0 0.0
        %484 = vmatpush1.msra.mxu0 0.0
        %485 = vmatprep.mubr.f32.mxu0 0.0
        %486 = vmatmul.mubr.f32.gmra.mrb[0].mxu0 %v419
        %v487 = vpop.f32.mrb[0].mxu0
        %v488 = vadd.f32 %v415, %v487
        %v489 = vpop.f32.mrb[0].mxu0
        %490 = vdwg.mxu0
        %v491 = vld [vmem:[#allocation2] sm:$0xff]
        %v492 = vld [vmem:[#allocation2 + $0x8] sm:$0xff]
        %vm493 = vcmask 130048
        %v495 = vsel %vm493, %v488, 0
        %v498 = vsel %vm493, %v491, 0
        %v501 = vsel %vm493, %v492, 0
        %503 = vmatprep.subr.mxu0 0.0
        %504 = vmatpush1.xpose.msra.mxu0 %v498
        %505 = vmatprep.subr.mxu0 0.0
        %506 = vmatpush1.xpose.msra.mxu0 %v501
        %507 = vmatprep.subr.mxu0 0.0
        %508 = vmatpush1.xpose.msra.mxu0 0.0
        %509 = vmatprep.subr.mxu0 0.0
        %510 = vmatpush1.xpose.msra.mxu0 0.0
        %511 = vmatprep.subr.mxu0 0.0
        %512 = vmatpush1.xpose.msra.mxu0 0.0
        %513 = vmatprep.subr.mxu0 0.0
        %514 = vmatpush1.xpose.msra.mxu0 0.0
        %515 = vmatprep.subr.mxu0 0.0
        %516 = vmatpush1.xpose.msra.mxu0 0.0
        %517 = vmatprep.subr.mxu0 0.0
        %518 = vmatpush1.xpose.msra.mxu0 0.0
        %519 = vmatprep.subr.mxu0 0.0
        %520 = vmatpush1.xpose.msra.mxu0 0.0
        %521 = vmatprep.subr.mxu0 0.0
        %522 = vmatpush1.xpose.msra.mxu0 0.0
        %523 = vmatprep.subr.mxu0 0.0
        %524 = vmatpush1.xpose.msra.mxu0 0.0
        %525 = vmatprep.subr.mxu0 0.0
        %526 = vmatpush1.xpose.msra.mxu0 0.0
        %527 = vmatprep.subr.mxu0 0.0
        %528 = vmatpush1.xpose.msra.mxu0 0.0
        %529 = vmatprep.subr.mxu0 0.0
        %530 = vmatpush1.xpose.msra.mxu0 0.0
        %531 = vmatprep.subr.mxu0 0.0
        %532 = vmatpush1.xpose.msra.mxu0 0.0
        %533 = vmatprep.subr.mxu0 0.0
        %534 = vmatpush1.xpose.msra.mxu0 0.0
        %535 = vmatprep.subr.mxu0 0.0
        %536 = vmatpush1.xpose.msra.mxu0 0.0
        %537 = vmatprep.subr.mxu0 0.0
        %538 = vmatpush1.xpose.msra.mxu0 0.0
        %539 = vmatprep.subr.mxu0 0.0
        %540 = vmatpush1.xpose.msra.mxu0 0.0
        %541 = vmatprep.subr.mxu0 0.0
        %542 = vmatpush1.xpose.msra.mxu0 0.0
        %543 = vmatprep.subr.mxu0 0.0
        %544 = vmatpush1.xpose.msra.mxu0 0.0
        %545 = vmatprep.subr.mxu0 0.0
        %546 = vmatpush1.xpose.msra.mxu0 0.0
        %547 = vmatprep.subr.mxu0 0.0
        %548 = vmatpush1.xpose.msra.mxu0 0.0
        %549 = vmatprep.subr.mxu0 0.0
        %550 = vmatpush1.xpose.msra.mxu0 0.0
        %551 = vmatprep.subr.mxu0 0.0
        %552 = vmatpush1.xpose.msra.mxu0 0.0
        %553 = vmatprep.subr.mxu0 0.0
        %554 = vmatpush1.xpose.msra.mxu0 0.0
        %555 = vmatprep.subr.mxu0 0.0
        %556 = vmatpush1.xpose.msra.mxu0 0.0
        %557 = vmatprep.subr.mxu0 0.0
        %558 = vmatpush1.xpose.msra.mxu0 0.0
        %559 = vmatprep.subr.mxu0 0.0
        %560 = vmatpush1.xpose.msra.mxu0 0.0
        %561 = vmatprep.subr.mxu0 0.0
        %562 = vmatpush1.xpose.msra.mxu0 0.0
        %563 = vmatprep.subr.mxu0 0.0
        %564 = vmatpush1.xpose.msra.mxu0 0.0
        %565 = vmatprep.subr.mxu0 0.0
        %566 = vmatpush1.xpose.msra.mxu0 0.0
        %567 = vmatprep.mubr.f32.mxu0 0.0
        %568 = vmatmul.mubr.f32.gmra.mrb[0].mxu0 %v495
        %v569 = vpop.f32.mrb[0].mxu0
        %v570 = vadd.f32 0.0, %v569
        %v571 = vpop.f32.mrb[0].mxu0
        %572 = vdwg.mxu0
        %v573 = vsel %vm493, %v570, -inf
        %574 = vmax.xlane.f32.xlu0 %v573
        %v575 = vpop.xlane.xlu0 %574
        %v576 = vsub.f32 %v570, %v575
        %v577 = vmul.f32 %v576, 1.442695
        %v578 = vpow.pop %v577
        %v579 = vsel %vm493, %v578, 0.0
        %580 = vadd.xlane.f32.xlu0 %v579
        %v581 = vpop.xlane.xlu0 %580
        %v582 = vrcp.pop %v581
        %v583 = vmul.f32 %v578, %v582
        %584 = vrot.lane.b32.xlu0 %v491, 96
        %v585 = vpop.permute.xlu0 %584
        %586 = vrot.lane.b32.xlu0 %v492, 96
        %v587 = vpop.permute.xlu0 %586
        %v591 = vsel %vm493, %v583, 0
        %593 = vmatprep.subr.mxu0 0.0
        %594 = vmatpush1.msra.mxu0 %v585
        %595 = vmatprep.subr.mxu0 0.0
        %596 = vmatpush1.msra.mxu0 %v587
        %597 = vmatprep.subr.mxu0 0.0
        %598 = vmatpush1.msra.mxu0 0.0
        %599 = vmatprep.subr.mxu0 0.0
        %600 = vmatpush1.msra.mxu0 0.0
        %601 = vmatprep.subr.mxu0 0.0
        %602 = vmatpush1.msra.mxu0 0.0
        %603 = vmatprep.subr.mxu0 0.0
        %604 = vmatpush1.msra.mxu0 0.0
        %605 = vmatprep.subr.mxu0 0.0
        %606 = vmatpush1.msra.mxu0 0.0
        %607 = vmatprep.subr.mxu0 0.0
        %608 = vmatpush1.msra.mxu0 0.0
        %609 = vmatprep.subr.mxu0 0.0
        %610 = vmatpush1.msra.mxu0 0.0
        %611 = vmatprep.subr.mxu0 0.0
        %612 = vmatpush1.msra.mxu0 0.0
        %613 = vmatprep.subr.mxu0 0.0
        %614 = vmatpush1.msra.mxu0 0.0
        %615 = vmatprep.subr.mxu0 0.0
        %616 = vmatpush1.msra.mxu0 0.0
        %617 = vmatprep.subr.mxu0 0.0
        %618 = vmatpush1.msra.mxu0 0.0
        %619 = vmatprep.subr.mxu0 0.0
        %620 = vmatpush1.msra.mxu0 0.0
        %621 = vmatprep.subr.mxu0 0.0
        %622 = vmatpush1.msra.mxu0 0.0
        %623 = vmatprep.subr.mxu0 0.0
        %624 = vmatpush1.msra.mxu0 0.0
        %625 = vmatprep.subr.mxu0 0.0
        %626 = vmatpush1.msra.mxu0 0.0
        %627 = vmatprep.subr.mxu0 0.0
        %628 = vmatpush1.msra.mxu0 0.0
        %629 = vmatprep.subr.mxu0 0.0
        %630 = vmatpush1.msra.mxu0 0.0
        %631 = vmatprep.subr.mxu0 0.0
        %632 = vmatpush1.msra.mxu0 0.0
        %633 = vmatprep.subr.mxu0 0.0
        %634 = vmatpush1.msra.mxu0 0.0
        %635 = vmatprep.subr.mxu0 0.0
        %636 = vmatpush1.msra.mxu0 0.0
        %637 = vmatprep.subr.mxu0 0.0
        %638 = vmatpush1.msra.mxu0 0.0
        %639 = vmatprep.subr.mxu0 0.0
        %640 = vmatpush1.msra.mxu0 0.0
        %641 = vmatprep.subr.mxu0 0.0
        %642 = vmatpush1.msra.mxu0 0.0
        %643 = vmatprep.subr.mxu0 0.0
        %644 = vmatpush1.msra.mxu0 0.0
        %645 = vmatprep.subr.mxu0 0.0
        %646 = vmatpush1.msra.mxu0 0.0
        %647 = vmatprep.subr.mxu0 0.0
        %648 = vmatpush1.msra.mxu0 0.0
        %649 = vmatprep.subr.mxu0 0.0
        %650 = vmatpush1.msra.mxu0 0.0
        %651 = vmatprep.subr.mxu0 0.0
        %652 = vmatpush1.msra.mxu0 0.0
        %653 = vmatprep.subr.mxu0 0.0
        %654 = vmatpush1.msra.mxu0 0.0
        %655 = vmatprep.subr.mxu0 0.0
        %656 = vmatpush1.msra.mxu0 0.0
        %657 = vmatprep.mubr.f32.mxu0 0.0
        %658 = vmatmul.mubr.f32.gmra.mrb[0].mxu0 %v591
        %v659 = vpop.f32.mrb[0].mxu0
        %v660 = vadd.f32 0.0, %v659
        %v661 = vpop.f32.mrb[0].mxu0
        %662 = vdwg.mxu0
        %663 = vst.msk [vmem:[%s284] sm:$0xff] %vm493, %v660
        %664 = vrot.lane.b32.xlu0 %v488, 112
        %v665 = vpop.permute.xlu0 %664
        %666 = vrot.lane.b32.xlu0 %v491, 112
        %v667 = vpop.permute.xlu0 %666
        %668 = vrot.lane.b32.xlu0 %v492, 112
        %v669 = vpop.permute.xlu0 %668
        %v670 = vsel %vm493, %v665, 0
        %v672 = vsel %vm493, %v667, 0
        %v674 = vsel %vm493, %v669, 0
        %676 = vmatprep.subr.mxu0 0.0
        %677 = vmatpush1.xpose.msra.mxu0 %v672
        %678 = vmatprep.subr.mxu0 0.0
        %679 = vmatpush1.xpose.msra.mxu0 %v674
        %680 = vmatprep.subr.mxu0 0.0
        %681 = vmatpush1.xpose.msra.mxu0 0.0
        %682 = vmatprep.subr.mxu0 0.0
        %683 = vmatpush1.xpose.msra.mxu0 0.0
        %684 = vmatprep.subr.mxu0 0.0
        %685 = vmatpush1.xpose.msra.mxu0 0.0
        %686 = vmatprep.subr.mxu0 0.0
        %687 = vmatpush1.xpose.msra.mxu0 0.0
        %688 = vmatprep.subr.mxu0 0.0
        %689 = vmatpush1.xpose.msra.mxu0 0.0
        %690 = vmatprep.subr.mxu0 0.0
        %691 = vmatpush1.xpose.msra.mxu0 0.0
        %692 = vmatprep.subr.mxu0 0.0
        %693 = vmatpush1.xpose.msra.mxu0 0.0
        %694 = vmatprep.subr.mxu0 0.0
        %695 = vmatpush1.xpose.msra.mxu0 0.0
        %696 = vmatprep.subr.mxu0 0.0
        %697 = vmatpush1.xpose.msra.mxu0 0.0
        %698 = vmatprep.subr.mxu0 0.0
        %699 = vmatpush1.xpose.msra.mxu0 0.0
        %700 = vmatprep.subr.mxu0 0.0
        %701 = vmatpush1.xpose.msra.mxu0 0.0
        %702 = vmatprep.subr.mxu0 0.0
        %703 = vmatpush1.xpose.msra.mxu0 0.0
        %704 = vmatprep.subr.mxu0 0.0
        %705 = vmatpush1.xpose.msra.mxu0 0.0
        %706 = vmatprep.subr.mxu0 0.0
        %707 = vmatpush1.xpose.msra.mxu0 0.0
        %708 = vmatprep.subr.mxu0 0.0
        %709 = vmatpush1.xpose.msra.mxu0 0.0
        %710 = vmatprep.subr.mxu0 0.0
        %711 = vmatpush1.xpose.msra.mxu0 0.0
        %712 = vmatprep.subr.mxu0 0.0
        %713 = vmatpush1.xpose.msra.mxu0 0.0
        %714 = vmatprep.subr.mxu0 0.0
        %715 = vmatpush1.xpose.msra.mxu0 0.0
        %716 = vmatprep.subr.mxu0 0.0
        %717 = vmatpush1.xpose.msra.mxu0 0.0
        %718 = vmatprep.subr.mxu0 0.0
        %719 = vmatpush1.xpose.msra.mxu0 0.0
        %720 = vmatprep.subr.mxu0 0.0
        %721 = vmatpush1.xpose.msra.mxu0 0.0
        %722 = vmatprep.subr.mxu0 0.0
        %723 = vmatpush1.xpose.msra.mxu0 0.0
        %724 = vmatprep.subr.mxu0 0.0
        %725 = vmatpush1.xpose.msra.mxu0 0.0
        %726 = vmatprep.subr.mxu0 0.0
        %727 = vmatpush1.xpose.msra.mxu0 0.0
        %728 = vmatprep.subr.mxu0 0.0
        %729 = vmatpush1.xpose.msra.mxu0 0.0
        %730 = vmatprep.subr.mxu0 0.0
        %731 = vmatpush1.xpose.msra.mxu0 0.0
        %732 = vmatprep.subr.mxu0 0.0
        %733 = vmatpush1.xpose.msra.mxu0 0.0
        %734 = vmatprep.subr.mxu0 0.0
        %735 = vmatpush1.xpose.msra.mxu0 0.0
        %736 = vmatprep.subr.mxu0 0.0
        %737 = vmatpush1.xpose.msra.mxu0 0.0
        %738 = vmatprep.subr.mxu0 0.0
        %739 = vmatpush1.xpose.msra.mxu0 0.0
        %740 = vmatprep.mubr.f32.mxu0 0.0
        %741 = vmatmul.mubr.f32.gmra.mrb[0].mxu0 %v670
        %v742 = vpop.f32.mrb[0].mxu0
        %v743 = vadd.f32 0.0, %v742
        %v744 = vpop.f32.mrb[0].mxu0
        %745 = vdwg.mxu0
        %v746 = vsel %vm493, %v743, -inf
        %747 = vmax.xlane.f32.xlu0 %v746
        %v748 = vpop.xlane.xlu0 %747
        %v749 = vsub.f32 %v743, %v748
        %v750 = vmul.f32 %v749, 1.442695
        %v751 = vpow.pop %v750
        %v752 = vsel %vm493, %v751, 0.0
        %753 = vadd.xlane.f32.xlu0 %v752
        %v754 = vpop.xlane.xlu0 %753
        %v755 = vrcp.pop %v754
        %v756 = vmul.f32 %v751, %v755
        %757 = vrot.lane.b32.xlu0 %v491, 80
        %v758 = vpop.permute.xlu0 %757
        %759 = vrot.lane.b32.xlu0 %v492, 80
        %v760 = vpop.permute.xlu0 %759
        %v764 = vsel %vm493, %v756, 0
        %766 = vmatprep.subr.mxu0 0.0
        %767 = vmatpush1.msra.mxu0 %v758
        %768 = vmatprep.subr.mxu0 0.0
        %769 = vmatpush1.msra.mxu0 %v760
        %770 = vmatprep.subr.mxu0 0.0
        %771 = vmatpush1.msra.mxu0 0.0
        %772 = vmatprep.subr.mxu0 0.0
        %773 = vmatpush1.msra.mxu0 0.0
        %774 = vmatprep.subr.mxu0 0.0
        %775 = vmatpush1.msra.mxu0 0.0
        %776 = vmatprep.subr.mxu0 0.0
        %777 = vmatpush1.msra.mxu0 0.0
        %778 = vmatprep.subr.mxu0 0.0
        %779 = vmatpush1.msra.mxu0 0.0
        %780 = vmatprep.subr.mxu0 0.0
        %781 = vmatpush1.msra.mxu0 0.0
        %782 = vmatprep.subr.mxu0 0.0
        %783 = vmatpush1.msra.mxu0 0.0
        %784 = vmatprep.subr.mxu0 0.0
        %785 = vmatpush1.msra.mxu0 0.0
        %786 = vmatprep.subr.mxu0 0.0
        %787 = vmatpush1.msra.mxu0 0.0
        %788 = vmatprep.subr.mxu0 0.0
        %789 = vmatpush1.msra.mxu0 0.0
        %790 = vmatprep.subr.mxu0 0.0
        %791 = vmatpush1.msra.mxu0 0.0
        %792 = vmatprep.subr.mxu0 0.0
        %793 = vmatpush1.msra.mxu0 0.0
        %794 = vmatprep.subr.mxu0 0.0
        %795 = vmatpush1.msra.mxu0 0.0
        %796 = vmatprep.subr.mxu0 0.0
        %797 = vmatpush1.msra.mxu0 0.0
        %798 = vmatprep.subr.mxu0 0.0
        %799 = vmatpush1.msra.mxu0 0.0
        %800 = vmatprep.subr.mxu0 0.0
        %801 = vmatpush1.msra.mxu0 0.0
        %802 = vmatprep.subr.mxu0 0.0
        %803 = vmatpush1.msra.mxu0 0.0
        %804 = vmatprep.subr.mxu0 0.0
        %805 = vmatpush1.msra.mxu0 0.0
        %806 = vmatprep.subr.mxu0 0.0
        %807 = vmatpush1.msra.mxu0 0.0
        %808 = vmatprep.subr.mxu0 0.0
        %809 = vmatpush1.msra.mxu0 0.0
        %810 = vmatprep.subr.mxu0 0.0
        %811 = vmatpush1.msra.mxu0 0.0
        %812 = vmatprep.subr.mxu0 0.0
        %813 = vmatpush1.msra.mxu0 0.0
        %814 = vmatprep.subr.mxu0 0.0
        %815 = vmatpush1.msra.mxu0 0.0
        %816 = vmatprep.subr.mxu0 0.0
        %817 = vmatpush1.msra.mxu0 0.0
        %818 = vmatprep.subr.mxu0 0.0
        %819 = vmatpush1.msra.mxu0 0.0
        %820 = vmatprep.subr.mxu0 0.0
        %821 = vmatpush1.msra.mxu0 0.0
        %822 = vmatprep.subr.mxu0 0.0
        %823 = vmatpush1.msra.mxu0 0.0
        %824 = vmatprep.subr.mxu0 0.0
        %825 = vmatpush1.msra.mxu0 0.0
        %826 = vmatprep.subr.mxu0 0.0
        %827 = vmatpush1.msra.mxu0 0.0
        %828 = vmatprep.subr.mxu0 0.0
        %829 = vmatpush1.msra.mxu0 0.0
        %830 = vmatprep.mubr.f32.mxu0 0.0
        %831 = vmatmul.mubr.f32.gmra.mrb[0].mxu0 %v764
        %v832 = vpop.f32.mrb[0].mxu0
        %v833 = vadd.f32 0.0, %v832
        %v834 = vpop.f32.mrb[0].mxu0
        %835 = vdwg.mxu0
        %837 = vrot.lane.b32.xlu0 %v833, 16
        %v838 = vpop.permute.xlu0 %837
        %vm840 = vcmask 261248
        %841 = vst.msk [vmem:[%s284] sm:$0xff] %vm840, %v838
        %s842 = sand.u32 %s142, 1
        %s843 = scalar_lea.sflag [#allocation5], %s842
        %s844 = sand.u32 %s142, 1
        %s845 = smul.addr %s844, 8
        %s846 = scalar_lea.vmem [#allocation9], %s845
        // Predicated region
        $region53: #{tpu_custom_call.1} parent=35 // pred_check
          %p847 = pneg %p152
        $region54: #{tpu_custom_call.1} parent=35 // pred_check_branch
          %849 = sbr.rel (%p847) target = $region56
        $region55: #{tpu_custom_call.1} parent=35 // pred_region
          %s851 = ssub.s32 128, 128
          %852 = vsyncadd %s843, %s851
          %s853 = smul.addr %s28, 2
          %s854 = sadd.s32 %s29, %s853
          %s855 = smul.addr %s854, 128
          %s856 = scalar_lea.hbm %s4, %s855
          %s858 = sshll.u32 %s846, 4
          %s859 = int_to_ptr.vmem [resolvable:$true] %s858
          %861 = dma.vmem_to_hbm [thread:$0]  %s859, 128, %s856, %s843
        $region56: #{tpu_custom_call.1} parent=35 // pred_fallthru
          _
      $region36: #{tpu_custom_call.1} parent=5 // pred_fallthru
        _
      %p862 = scmp.le.s32.totalorder 2, %s19
      // Predicated region
      $region57: #{tpu_custom_call.1} parent=5 // pred_check
        %p863 = pneg %p862
      $region58: #{tpu_custom_call.1} parent=5 // pred_check_branch
        %865 = sbr.rel (%p863) target = $region60
      $region59: #{tpu_custom_call.1} parent=5 // pred_region
        %s866 = ssub.s32 %s19, 2
        // Predicated region
        $region61: #{tpu_custom_call.1} parent=59 // pred_check
          %p867 = pneg %p158
        $region62: #{tpu_custom_call.1} parent=59 // pred_check_branch
          %869 = sbr.rel (%p867) target = $region64
        $region63: #{tpu_custom_call.1} parent=59 // pred_region
          %s870 = sand.u32 %s143, 1
          %s871 = scalar_lea.sflag [#allocation5], %s870
          %s872 = sand.u32 %s143, 1
          %s873 = smul.addr %s872, 8
          %s874 = scalar_lea.vmem [#allocation9], %s873
          %875 = dma.done %s871, 128
        $region64: #{tpu_custom_call.1} parent=59 // pred_fallthru
          _
      $region60: #{tpu_custom_call.1} parent=5 // pred_fallthru
        _
    $region6: #{tpu_custom_call.1} parent=1 // loop_footer
      %s23 = sadd.s32 1, %s19
    $region7: #{tpu_custom_call.1} parent=1 // loop_footer_branch
      %18 = sbr.rel target = $region3
    $region8: #{tpu_custom_call.1} parent=1 // loop_exit
      _
    %876 = vsyncpa [#allocation4], 1
    %s877 = scalar_lea.sflag [#allocation4], 1
    %878 = vsyncpa %s877, 1
    %879 = vsyncpa [#allocation7], 1
    %s880 = scalar_lea.sflag [#allocation7], 1
    %881 = vsyncpa %s880, 1
    %882 = vsyncpa [#allocation5], 1
    %s883 = scalar_lea.sflag [#allocation5], 1
    %884 = vsyncpa %s883, 1

</llo_original>
